<compile_context>
chip_gen: v7x
topology: tpu7x:2x2x1
jax: 0.10.0
libtpu: 0.0.40
codegen_flags: <defaults>
</compile_context>

<pallas_src>
import jax
import jax.numpy as jnp
from jax import lax
from jax.experimental import pallas as pl
from jax.experimental.pallas import tpu as pltpu

TEMPERATURE = 0.1   # InfoNCE default
NORM_EPS = 1e-12    # F.normalize default eps


def _round_up(x, m):
    return ((x + m - 1) // m) * m


def _vmem_budget_bytes():
    """Per-generation budget for double-buffered input blocks + f32 temps."""
    try:
        kind = jax.devices()[0].device_kind.lower()
    except Exception:
        kind = ""
    if "v7" in kind:
        return 40 * 2**20            # 64 MiB physical VMEM per TensorCore
    if "v4" in kind or "v5" in kind or "v6" in kind:
        return 80 * 2**20            # 128 MiB physical VMEM
    return 40 * 2**20                # unknown chip: be conservative


def _choose_tile_b(B, K, D, grp_itemsize, hypo_itemsize, budget):
    # Bytes of VMEM per batch row: double-buffered hypo/pos/neg input blocks,
    # ~4 live f32 [TB, D] temps, double-buffered small f32 output slab.
    row = 2 * (hypo_itemsize + 2 * K * grp_itemsize) * D + 4 * D * 4 + 2 * 8 * 4
    fit = max(8, budget // max(row, 1))
    tile_b = min(512, fit)
    # Prefer >= 2 grid tiles once the batch is big enough (megacore sharding on v7x,
    # harmless on single-TC chips).
    if B > 8:
        tile_b = min(tile_b, _round_up(-(-B // 2), 8))
    tile_b = max(8, (tile_b // 8) * 8)
    return min(tile_b, _round_up(B, 8))


def _contrastive_reg_kernel(hypo_ref, pos_ref, neg_ref, out_ref):
    # hypo_ref: [TB, D] VMEM; pos_ref/neg_ref: [TB, K*D] VMEM (K merged into lanes);
    # out_ref:  [8, TB] VMEM (per-example loss of this batch tile, lane-dense).
    tb, d = hypo_ref.shape
    k_total = pos_ref.shape[1] // d
    inv_t = jnp.float32(1.0 / TEMPERATURE)
    eps_sq = jnp.float32(NORM_EPS * NORM_EPS)

    q = hypo_ref[...].astype(jnp.float32)                                   # [TB, D]
    # 1 / max(||q||, eps) == rsqrt(max(sum(q^2), eps^2)); rsqrt runs on the EUP.
    qn = q * lax.rsqrt(jnp.maximum(jnp.sum(q * q, axis=-1, keepdims=True), eps_sq))

    def group_logit(grp_ref):
        # torch.sum(rep, dim=0) over the K group members (f32 accumulation, one
        # static lane-slice at a time), then the normalized dot with qn. The 1/||.||
        # factor is folded into the scalar logit so no extra [TB, D] temp is made.
        acc = grp_ref[:, 0:d].astype(jnp.float32)
        for k in range(1, k_total):                                         # static, unrolled
            acc = acc + grp_ref[:, k * d:(k + 1) * d].astype(jnp.float32)
        dot = jnp.sum(qn * acc, axis=-1, keepdims=True)                     # [TB, 1]
        ss = jnp.sum(acc * acc, axis=-1, keepdims=True)                     # [TB, 1]
        return dot * lax.rsqrt(jnp.maximum(ss, eps_sq))

    # Finish the positive path before starting the negative one (fewer live [TB,D] f32).
    pos_logit = group_logit(pos_ref)
    neg_logit = group_logit(neg_ref)

    # loss_i = logsumexp([lp, ln]) - lp = softplus((ln - lp) / T)   (stable form)
    x = (neg_logit - pos_logit) * inv_t
    loss = jnp.maximum(x, 0.0) + jnp.log1p(jnp.exp(-jnp.abs(x)))            # [TB, 1]
    # Lane-dense store: put the TB losses along lanes, replicated over 8 sublanes
    # so the whole (8, TB) block is written with full-width vector stores.
    out_ref[...] = jnp.broadcast_to(loss.reshape(1, tb), (8, tb))


def contrastive_reg_loss(hypo, pos_groups, neg_groups, *, tile_b=None):
    """hypo: [B, D]; pos_groups/neg_groups: [B, K, D] (any float dtype). Returns scalar f32 loss."""
    B, D = hypo.shape
    Bp, K, Dp = pos_groups.shape
    assert Bp == B and Dp == D and neg_groups.shape == (B, K, D)

    budget = _vmem_budget_bytes()
    hypo_itemsize = jnp.dtype(hypo.dtype).itemsize
    grp_itemsize = max(jnp.dtype(pos_groups.dtype).itemsize,
                       jnp.dtype(neg_groups.dtype).itemsize)
    if tile_b is None:
        tile_b = _choose_tile_b(B, K, D, grp_itemsize, hypo_itemsize, budget)
    num_tiles = pl.cdiv(B, tile_b)

    # Free re-layout (contiguous merge): K moves onto the lane axis -> no sublane padding,
    # no strided sublane reads inside the kernel. NO padded HBM copies are made.
    pos_flat = pos_groups.reshape(B, K * D)
    neg_flat = neg_groups.reshape(B, K * D)

    # VMEM limit sized from the actual block footprint (double-buffered) + f32 temps,
    # clamped to the per-generation budget (safe on v7x's 64 MiB as well as 128 MiB parts).
    hypo_bytes = tile_b * D * hypo_itemsize
    grp_bytes = tile_b * K * D * (jnp.dtype(pos_groups.dtype).itemsize
                                  + jnp.dtype(neg_groups.dtype).itemsize)
    out_bytes = 8 * tile_b * 4
    est = 2 * (hypo_bytes + grp_bytes + out_bytes) + 4 * tile_b * D * 4 + (2 << 20)
    vmem_limit = int(max(32 * 2**20, min(est, budget + (16 << 20))))

    out = pl.pallas_call(
        _contrastive_reg_kernel,
        out_shape=jax.ShapeDtypeStruct((num_tiles * 8, tile_b), jnp.float32),
        grid_spec=pltpu.PrefetchScalarGridSpec(
            num_scalar_prefetch=0,
            grid=(num_tiles,),
            in_specs=[
                # Last block dims equal the FULL array extents -> legal without padding;
                # the ragged batch tail (if B % tile_b != 0) is handled by Pallas and the
                # resulting garbage rows are discarded below.
                pl.BlockSpec((tile_b, D), lambda g: (g, 0)),
                pl.BlockSpec((tile_b, K * D), lambda g: (g, 0)),
                pl.BlockSpec((tile_b, K * D), lambda g: (g, 0)),
            ],
            out_specs=pl.BlockSpec((8, tile_b), lambda g: (g, 0)),
        ),
        compiler_params=pltpu.CompilerParams(
            dimension_semantics=("parallel",),
            vmem_limit_bytes=vmem_limit,
        ),
    )(hypo, pos_flat, neg_flat)

    # Sublane 0 of each per-tile (8, tile_b) slab holds that tile's losses. Flatten in
    # grid order, keep only the TRUE batch (drops ragged-tail garbage), mean in JAX.
    per_example = out.reshape(num_tiles, 8, tile_b)[:, 0, :].reshape(-1)[:B]
    return jnp.sum(per_example) / jnp.float32(B)


def _reference(hypo, pos_groups, neg_groups):
    q = hypo.astype(jnp.float32)
    p = jnp.sum(pos_groups.astype(jnp.float32), axis=1)
    n = jnp.sum(neg_groups.astype(jnp.float32), axis=1)
    norm = lambda x: x / jnp.maximum(jnp.linalg.norm(x, axis=-1, keepdims=True), NORM_EPS)
    q, p, n = norm(q), norm(p), norm(n)
    lp = jnp.sum(q * p, axis=-1) / TEMPERATURE
    ln = jnp.sum(q * n, axis=-1) / TEMPERATURE
    lse = jax.scipy.special.logsumexp(jnp.stack([lp, ln], axis=-1), axis=-1)
    return jnp.mean(lse - lp)


if __name__ == "__main__":
    B, K, D = 8, 4, 32  # batch, sentences per group, embedding dim (small demo shapes)
    key = jax.random.PRNGKey(0)
    k1, k2, k3 = jax.random.split(key, 3)
    hypo = jax.random.normal(k1, (B, D), dtype=jnp.float32)
    pos_groups = jax.random.normal(k2, (B, K, D), dtype=jnp.float32)
    neg_groups = jax.random.normal(k3, (B, K, D), dtype=jnp.float32)

    loss = jax.jit(contrastive_reg_loss)(hypo, pos_groups, neg_groups)
    jax.block_until_ready(loss)

    ref = _reference(hypo, pos_groups, neg_groups)
    assert jnp.allclose(loss, ref, atol=1e-5, rtol=1e-5), (loss, ref)

    print("KERNEL_OK")
</pallas_src>

<mosaic_0001>
module attributes {stable_mosaic.version = 11 : i64} {
  func.func @_contrastive_reg_kernel(%arg0: i32, %arg1: memref<8x32xf32, #tpu.memory_space<vmem>>, %arg2: memref<8x128xf32, #tpu.memory_space<vmem>>, %arg3: memref<8x128xf32, #tpu.memory_space<vmem>>, %arg4: memref<8x8xf32, #tpu.memory_space<vmem>>) attributes {dimension_semantics = [#tpu.dimension_semantics<parallel>], iteration_bounds = array<i64: 1>, scalar_prefetch = 0 : i64, scratch_operands = 0 : i64, tpu.core_type = #tpu.core_type<tc>, window_params = [{transform_indices = @transform_0, window_bounds = array<i64: 8, 32>}, {transform_indices = @transform_1, window_bounds = array<i64: 8, 128>}, {transform_indices = @transform_2, window_bounds = array<i64: 8, 128>}, {transform_indices = @transform_3, window_bounds = array<i64: 8, 8>}]} {
    %c0 = arith.constant 0 : index
    %c0_0 = arith.constant 0 : index
    %0 = vector.load %arg1[%c0, %c0_0] : memref<8x32xf32, #tpu.memory_space<vmem>>, vector<8x32xf32>
    %1 = arith.mulf %0, %0 : vector<8x32xf32>
    %cst = arith.constant dense<0.000000e+00> : vector<8xf32>
    %2 = vector.multi_reduction <add>, %1, %cst [1] : vector<8x32xf32> to vector<8xf32>
    %3 = vector.shape_cast %2 : vector<8xf32> to vector<8x1xf32>
    %cst_1 = arith.constant 1.000000e-24 : f32
    %4 = vector.broadcast %cst_1 : f32 to vector<8x1xf32>
    %5 = arith.maximumf %3, %4 : vector<8x1xf32>
    %6 = math.rsqrt %5 : vector<8x1xf32>
    %7 = vector.broadcast %6 : vector<8x1xf32> to vector<8x32xf32>
    %8 = arith.mulf %0, %7 : vector<8x32xf32>
    %c0_2 = arith.constant 0 : index
    %c0_3 = arith.constant 0 : index
    %9 = vector.load %arg2[%c0_2, %c0_3] : memref<8x128xf32, #tpu.memory_space<vmem>>, vector<8x32xf32>
    %c0_4 = arith.constant 0 : index
    %c32 = arith.constant 32 : index
    %10 = vector.load %arg2[%c0_4, %c32] : memref<8x128xf32, #tpu.memory_space<vmem>>, vector<8x32xf32>
    %11 = arith.addf %9, %10 : vector<8x32xf32>
    %c0_5 = arith.constant 0 : index
    %c64 = arith.constant 64 : index
    %12 = vector.load %arg2[%c0_5, %c64] : memref<8x128xf32, #tpu.memory_space<vmem>>, vector<8x32xf32>
    %13 = arith.addf %11, %12 : vector<8x32xf32>
    %c0_6 = arith.constant 0 : index
    %c96 = arith.constant 96 : index
    %14 = vector.load %arg2[%c0_6, %c96] : memref<8x128xf32, #tpu.memory_space<vmem>>, vector<8x32xf32>
    %15 = arith.addf %13, %14 : vector<8x32xf32>
    %16 = arith.mulf %8, %15 : vector<8x32xf32>
    %cst_7 = arith.constant dense<0.000000e+00> : vector<8xf32>
    %17 = vector.multi_reduction <add>, %16, %cst_7 [1] : vector<8x32xf32> to vector<8xf32>
    %18 = vector.shape_cast %17 : vector<8xf32> to vector<8x1xf32>
    %19 = arith.mulf %15, %15 : vector<8x32xf32>
    %cst_8 = arith.constant dense<0.000000e+00> : vector<8xf32>
    %20 = vector.multi_reduction <add>, %19, %cst_8 [1] : vector<8x32xf32> to vector<8xf32>
    %21 = vector.shape_cast %20 : vector<8xf32> to vector<8x1xf32>
    %cst_9 = arith.constant 1.000000e-24 : f32
    %22 = vector.broadcast %cst_9 : f32 to vector<8x1xf32>
    %23 = arith.maximumf %21, %22 : vector<8x1xf32>
    %24 = math.rsqrt %23 : vector<8x1xf32>
    %25 = arith.mulf %18, %24 : vector<8x1xf32>
    %c0_10 = arith.constant 0 : index
    %c0_11 = arith.constant 0 : index
    %26 = vector.load %arg3[%c0_10, %c0_11] : memref<8x128xf32, #tpu.memory_space<vmem>>, vector<8x32xf32>
    %c0_12 = arith.constant 0 : index
    %c32_13 = arith.constant 32 : index
    %27 = vector.load %arg3[%c0_12, %c32_13] : memref<8x128xf32, #tpu.memory_space<vmem>>, vector<8x32xf32>
    %28 = arith.addf %26, %27 : vector<8x32xf32>
    %c0_14 = arith.constant 0 : index
    %c64_15 = arith.constant 64 : index
    %29 = vector.load %arg3[%c0_14, %c64_15] : memref<8x128xf32, #tpu.memory_space<vmem>>, vector<8x32xf32>
    %30 = arith.addf %28, %29 : vector<8x32xf32>
    %c0_16 = arith.constant 0 : index
    %c96_17 = arith.constant 96 : index
    %31 = vector.load %arg3[%c0_16, %c96_17] : memref<8x128xf32, #tpu.memory_space<vmem>>, vector<8x32xf32>
    %32 = arith.addf %30, %31 : vector<8x32xf32>
    %33 = arith.mulf %8, %32 : vector<8x32xf32>
    %cst_18 = arith.constant dense<0.000000e+00> : vector<8xf32>
    %34 = vector.multi_reduction <add>, %33, %cst_18 [1] : vector<8x32xf32> to vector<8xf32>
    %35 = vector.shape_cast %34 : vector<8xf32> to vector<8x1xf32>
    %36 = arith.mulf %32, %32 : vector<8x32xf32>
    %cst_19 = arith.constant dense<0.000000e+00> : vector<8xf32>
    %37 = vector.multi_reduction <add>, %36, %cst_19 [1] : vector<8x32xf32> to vector<8xf32>
    %38 = vector.shape_cast %37 : vector<8xf32> to vector<8x1xf32>
    %cst_20 = arith.constant 1.000000e-24 : f32
    %39 = vector.broadcast %cst_20 : f32 to vector<8x1xf32>
    %40 = arith.maximumf %38, %39 : vector<8x1xf32>
    %41 = math.rsqrt %40 : vector<8x1xf32>
    %42 = arith.mulf %35, %41 : vector<8x1xf32>
    %43 = arith.subf %42, %25 : vector<8x1xf32>
    %cst_21 = arith.constant 1.000000e+01 : f32
    %44 = vector.broadcast %cst_21 : f32 to vector<8x1xf32>
    %45 = arith.mulf %43, %44 : vector<8x1xf32>
    %cst_22 = arith.constant 0.000000e+00 : f32
    %46 = vector.broadcast %cst_22 : f32 to vector<8x1xf32>
    %47 = arith.maximumf %45, %46 : vector<8x1xf32>
    %48 = math.absf %45 : vector<8x1xf32>
    %cst_23 = arith.constant 0.000000e+00 : f32
    %49 = vector.broadcast %cst_23 : f32 to vector<8x1xf32>
    %50 = arith.subf %49, %48 : vector<8x1xf32>
    %51 = math.exp %50 : vector<8x1xf32>
    %52 = math.log1p %51 : vector<8x1xf32>
    %53 = arith.addf %47, %52 : vector<8x1xf32>
    %54 = vector.shape_cast %53 : vector<8x1xf32> to vector<1x8xf32>
    %55 = vector.shape_cast %54 : vector<1x8xf32> to vector<1x8xf32>
    %56 = vector.broadcast %55 : vector<1x8xf32> to vector<8x8xf32>
    %c0_24 = arith.constant 0 : index
    %c0_25 = arith.constant 0 : index
    %57 = vector.load %arg4[%c0_24, %c0_25] : memref<8x8xf32, #tpu.memory_space<vmem>>, vector<8x8xf32>
    tpu.vector_store %arg4[%c0_24, %c0_25], %56 {strides = array<i32>} : memref<8x8xf32, #tpu.memory_space<vmem>>, vector<8x8xf32>,
    return
  }
  func.func @transform_0(%arg0: i32) -> (i32, i32) {
    %c0_i32 = arith.constant 0 : i32
    %c0_i32_0 = arith.constant 0 : i32
    return %arg0, %c0_i32 : i32, i32
  }
  func.func @transform_1(%arg0: i32) -> (i32, i32) {
    %c0_i32 = arith.constant 0 : i32
    %c0_i32_0 = arith.constant 0 : i32
    return %arg0, %c0_i32 : i32, i32
  }
  func.func @transform_2(%arg0: i32) -> (i32, i32) {
    %c0_i32 = arith.constant 0 : i32
    %c0_i32_0 = arith.constant 0 : i32
    return %arg0, %c0_i32 : i32, i32
  }
  func.func @transform_3(%arg0: i32) -> (i32, i32) {
    %c0_i32 = arith.constant 0 : i32
    %c0_i32_0 = arith.constant 0 : i32
    return %arg0, %c0_i32 : i32, i32
  }
}

</mosaic_0001>

<llo_original>
// kernel: contrastive_reg_loss.1
$region0: #{contrastive_reg_loss.1}
  #allocation0 [shape = 'u32[]', space=smem, size = 0x4, offset = 0x4, fixed_abs, tag = 'smem constant byte address 0x4 - core index']
  #allocation1 [shape = 'u32[144,128]{1,0:T(1,128)}', space=vmem, size = 0x12000, scoped, tag = 'internal scratch']
  %s0 = inlined_call_operand.vmem [shape: f32[8,32], index: 0, kind: input, shape index: {}]
  %s1 = inlined_call_operand.vmem [shape: f32[8,128], index: 1, kind: input, shape index: {}]
  %s2 = inlined_call_operand.vmem [shape: f32[8,128], index: 2, kind: input, shape index: {}]
  %s3 = inlined_call_operand.vmem [shape: f32[8,8], index: 3, kind: output, shape index: {}]
  %s4 = sld [smem:[#allocation0]]
  $region22: #{contrastive_reg_loss.1} parent=0
    _
  %s6 = ssub.s32 1, %s4
  %s7 = scalar_select 0, %s6, %s4
  // Predicated region
  $region2: #{contrastive_reg_loss.1} parent=0 // pred_check
    _
  $region3: #{contrastive_reg_loss.1} parent=0 // pred_check_branch
    %9 = sbr.rel (0) target = $region5
  $region4: #{contrastive_reg_loss.1} parent=0 // pred_region
    _
  $region5: #{contrastive_reg_loss.1} parent=0 // pred_fallthru
    _
  // Predicated region
  $region6: #{contrastive_reg_loss.1} parent=0 // pred_check
    _
  $region7: #{contrastive_reg_loss.1} parent=0 // pred_check_branch
    %11 = sbr.rel (0) target = $region9
  $region8: #{contrastive_reg_loss.1} parent=0 // pred_region
    _
  $region9: #{contrastive_reg_loss.1} parent=0 // pred_fallthru
    _
  // Predicated region
  $region10: #{contrastive_reg_loss.1} parent=0 // pred_check
    _
  $region11: #{contrastive_reg_loss.1} parent=0 // pred_check_branch
    %13 = sbr.rel (0) target = $region13
  $region12: #{contrastive_reg_loss.1} parent=0 // pred_region
    _
  $region13: #{contrastive_reg_loss.1} parent=0 // pred_fallthru
    _
  %v14 = vld [vmem:[%s0] sm:$0xff]
  %v15 = vmul.f32 %v14, %v14
  %vm16 = vcmask 261120
  %v17 = vsel %vm16, %v15, 0.0
  %18 = vadd.xlane.f32.xlu0 %v17
  %v19 = vpop.xlane.xlu0 %18
  %v20 = vmax.f32 %v19, 1e-24
  %v21 = vrsqrt.pop %v20
  %v22 = vmul.f32 %v14, %v21
  %v23 = vld [vmem:[%s1] sm:$0xff]
  %25 = vrot.lane.b32.xlu0 %v23, 96
  %v26 = vpop.permute.xlu0 %25
  %v28 = vadd.f32 %v23, %v26
  %29 = vrot.lane.b32.xlu0 %v23, 64
  %v30 = vpop.permute.xlu0 %29
  %v32 = vadd.f32 %v28, %v30
  %33 = vrot.lane.b32.xlu0 %v23, 32
  %v34 = vpop.permute.xlu0 %33
  %v36 = vadd.f32 %v32, %v34
  %v37 = vmul.f32 %v22, %v36
  %v38 = vsel %vm16, %v37, 0.0
  %39 = vadd.xlane.f32.xlu0 %v38
  %v40 = vpop.xlane.xlu0 %39
  %v41 = vmul.f32 %v36, %v36
  %v42 = vsel %vm16, %v41, 0.0
  %43 = vadd.xlane.f32.xlu0 %v42
  %v44 = vpop.xlane.xlu0 %43
  %v45 = vmax.f32 %v44, 1e-24
  %v46 = vrsqrt.pop %v45
  %v47 = vmul.f32 %v40, %v46
  %v48 = vld [vmem:[%s2] sm:$0xff]
  %50 = vrot.lane.b32.xlu0 %v48, 96
  %v51 = vpop.permute.xlu0 %50
  %v53 = vadd.f32 %v48, %v51
  %54 = vrot.lane.b32.xlu0 %v48, 64
  %v55 = vpop.permute.xlu0 %54
  %v57 = vadd.f32 %v53, %v55
  %58 = vrot.lane.b32.xlu0 %v48, 32
  %v59 = vpop.permute.xlu0 %58
  %v61 = vadd.f32 %v57, %v59
  %v62 = vmul.f32 %v22, %v61
  %v63 = vsel %vm16, %v62, 0.0
  %64 = vadd.xlane.f32.xlu0 %v63
  %v65 = vpop.xlane.xlu0 %64
  %v66 = vmul.f32 %v61, %v61
  %v67 = vsel %vm16, %v66, 0.0
  %68 = vadd.xlane.f32.xlu0 %v67
  %v69 = vpop.xlane.xlu0 %68
  %v70 = vmax.f32 %v69, 1e-24
  %v71 = vrsqrt.pop %v70
  %v72 = vmul.f32 %v65, %v71
  %v73 = vsub.f32 %v72, %v47
  %v74 = vmul.f32 %v73, 10.0
  %v75 = vmax.f32 %v74, 0.0
  %v76 = vand.u32 2147483647, %v74
  %v77 = vsub.f32 0.0, %v76
  %v78 = vmul.f32 %v77, 1.442695
  %v79 = vpow.pop %v78
  %v80 = vadd.f32 %v79, 1.0
  %v81 = vlog2.pop %v80
  %v82 = vmul.f32 %v81, 0.6931472
  %v83 = vmul.f32 -0.5, %v79
  %v84 = vadd.f32 %v83, 1.0
  %v85 = vmul.f32 %v84, %v79
  %v86 = vand.u32 2147483647, %v79
  %vm87 = vcmp.lt.f32.partialorder %v86, 0.0004427343
  %v88 = vsel %vm87, %v85, %v82
  %v89 = vadd.f32 %v75, %v88
  %v91 = vlaneseq
  %v92 = vand.u32 %v91, 127
  %v93 = vlaneseq
  %v94 = vshrl.u32 %v93, 7
  %v95 = vsub.s32 %v92, %v94
  %v96 = vrot.slane %v89, %v95
  %vm97 = vcmask 1042434
  %v98 = vsel %vm97, %v96, %v96
  %vm99 = vcmask 1043459
  %v100 = vsel %vm99, %v96, %v98
  %vm101 = vcmask 1044484
  %v102 = vsel %vm101, %v96, %v100
  %vm103 = vcmask 1045509
  %v104 = vsel %vm103, %v96, %v102
  %vm105 = vcmask 1046534
  %v106 = vsel %vm105, %v96, %v104
  %vm107 = vcmask 1047559
  %v108 = vsel %vm107, %v96, %v106
  %vm110 = vcmask 64512
  %111 = vst.msk [vmem:[%s3] sm:$0xff] %vm110, %v108
  // Predicated region
  $region14: #{contrastive_reg_loss.1} parent=0 // pred_check
    _
  $region15: #{contrastive_reg_loss.1} parent=0 // pred_check_branch
    %113 = sbr.rel (0) target = $region17
  $region16: #{contrastive_reg_loss.1} parent=0 // pred_region
    _
  $region17: #{contrastive_reg_loss.1} parent=0 // pred_fallthru
    _
  // Predicated region
  $region18: #{contrastive_reg_loss.1} parent=0 // pred_check
    _
  $region19: #{contrastive_reg_loss.1} parent=0 // pred_check_branch
    %115 = sbr.rel (0) target = $region21
  $region20: #{contrastive_reg_loss.1} parent=0 // pred_region
    _
  $region21: #{contrastive_reg_loss.1} parent=0 // pred_fallthru
    _

</llo_original>
